<compile_context>
chip_gen: v6e
topology: v6e:2x2x1
jax: 0.10.0
libtpu: 0.0.40
codegen_flags: <defaults>
</compile_context>

<pallas_src>
from functools import partial

import jax
import jax.numpy as jnp
from jax import lax
from jax.experimental import pallas as pl
from jax.experimental.pallas import tpu as pltpu

_LANES = 128


def _round_up(v, m):
    return ((v + m - 1) // m) * m


def _vmem_capacity_bytes():
    try:
        return int(pltpu.get_tpu_info().vmem_capacity_bytes)
    except Exception:
        return 64 * 2**20  # conservative default (v7x per-core VMEM)


# --------------------------------------------------------------------------- #
# Fused kernel: one deep im2col GEMM -> +bias -> LayerNorm(channels) -> [swish]
# --------------------------------------------------------------------------- #
def _gemm_ln_kernel(x_ref, w_ref, p_ref, o_ref, *, cout_true, apply_swish, eps):
    # x_ref: (tile_m, K_pad)  bf16 im2col rows        (double-buffered)
    # w_ref: (K_pad, cout_p)  bf16 folded conv taps   (resident)
    # p_ref: (3, cout_p)      f32  [bias; gamma; beta] (resident)
    # o_ref: (tile_m, cout_p)
    cout_p = o_ref.shape[-1]

    # All (kh, kw, cin) taps live in the contraction dim: one deep MXU matmul,
    # accumulation stays inside the MXU (no VALU accumulator passes).
    y = jnp.dot(x_ref[...], w_ref[...], preferred_element_type=jnp.float32)
    p = p_ref[...]
    y = y + p[0:1, :]                                   # bias

    # LayerNorm over the true channel count (padded lanes hold exact zeros).
    if cout_p != cout_true:
        lane = lax.broadcasted_iota(jnp.int32, (1, cout_p), 1)
        valid = lane < cout_true
        y_m = jnp.where(valid, y, 0.0)
    else:
        valid = None
        y_m = y
    inv_c = 1.0 / cout_true
    mean = jnp.sum(y_m, axis=-1, keepdims=True) * inv_c
    centered = y - mean
    c_m = jnp.where(valid, centered, 0.0) if valid is not None else centered
    var = jnp.sum(c_m * c_m, axis=-1, keepdims=True) * inv_c
    yn = centered * lax.rsqrt(var + eps) * p[1:2, :] + p[2:3, :]
    if apply_swish:
        yn = yn * jax.nn.sigmoid(yn)
    o_ref[...] = yn.astype(o_ref.dtype)


# --------------------------------------------------------------------------- #
# Tile-size choice: largest row tile that fits the per-step VMEM budget,
# accounting for the resident weights, capped so the grid keeps >= 2 steps.
# --------------------------------------------------------------------------- #
def _pick_tile_m(n_tokens, k_pad, cout_p, in_item, out_item, budget,
                 max_tile=1024):
    per_row = (2 * k_pad * in_item          # double-buffered input rows
               + 2 * cout_p * out_item      # double-buffered output rows
               + cout_p * 4)                # f32 intermediates headroom
    resident = 2 * k_pad * cout_p * in_item + 2 * 3 * cout_p * 4
    avail = max(budget - resident, 8 * per_row)
    tile = int(avail // per_row)
    if n_tokens > 16:
        # Keep >= 2 grid steps so ("parallel",) can shard across v7x's 2 TCs.
        tile = min(tile, pl.cdiv(n_tokens, 2))
    tile = max(8, min(tile, max_tile, n_tokens))
    return _round_up(tile, 8)


# --------------------------------------------------------------------------- #
# One conv + LayerNorm (+ swish) stage as an im2col GEMM
# --------------------------------------------------------------------------- #
def _conv_ln_stage(x_nhwc, w_kkio, bias, gamma, beta, *, k, stride, pad,
                   apply_swish, out_dtype, compute_dtype=jnp.bfloat16, eps=1e-5):
    B, H, W, cin = x_nhwc.shape
    cout = w_kkio.shape[-1]
    cout_p = _round_up(cout, _LANES)
    Ho = (H + 2 * pad - k) // stride + 1
    Wo = (W + 2 * pad - k) // stride + 1
    K = k * k * cin
    K_pad = _round_up(K, _LANES)
    in_item = jnp.dtype(compute_dtype).itemsize
    out_item = jnp.dtype(out_dtype).itemsize

    # ---- im2col glue (cast to bf16 BEFORE pad/slice; (kh, kw, c) tap order) --
    xp = jnp.pad(x_nhwc.astype(compute_dtype),
                 ((0, 0), (pad, pad), (pad, pad), (0, 0)))
    cols = []
    for kh in range(k):
        for kw in range(k):
            cols.append(xp[:, kh:kh + (Ho - 1) * stride + 1:stride,
                            kw:kw + (Wo - 1) * stride + 1:stride, :])
    patches = jnp.concatenate(cols, axis=-1).reshape(B * Ho * Wo, K)
    if K_pad != K:
        patches = jnp.pad(patches, ((0, 0), (0, K_pad - K)))

    n_tok = B * Ho * Wo
    cap = _vmem_capacity_bytes()
    tile_m = _pick_tile_m(n_tok, K_pad, cout_p, in_item, out_item,
                          budget=cap // 4)
    n_pad = _round_up(n_tok, tile_m)
    if n_pad != n_tok:
        patches = jnp.pad(patches, ((0, n_pad - n_tok), (0, 0)))
    n_blocks = n_pad // tile_m

    # ---- resident weights / LN params (taps folded into contraction rows) ---
    wk = w_kkio.reshape(K, cout).astype(compute_dtype)          # (kh,kw,c) rows
    wk = jnp.pad(wk, ((0, K_pad - K), (0, cout_p - cout)))
    pk = jnp.stack([jnp.pad(bias, (0, cout_p - cout)),
                    jnp.pad(gamma, (0, cout_p - cout)),
                    jnp.pad(beta, (0, cout_p - cout))]).astype(jnp.float32)

    est_step = (2 * tile_m * K_pad * in_item        # activation block (dbl buf)
                + 2 * tile_m * cout_p * out_item    # output block (dbl buf)
                + 2 * K_pad * cout_p * in_item      # resident weights
                + 2 * 3 * cout_p * 4                # resident LN params
                + tile_m * cout_p * 4)              # f32 intermediates headroom
    vmem_limit = int(min(cap * 3 // 4, max(2 * est_step, 32 * 2**20)))
    cost = pl.CostEstimate(
        flops=int(2 * n_pad * K_pad * cout_p + 10 * n_pad * cout_p),
        transcendentals=int(n_pad * ((cout_p + 1) if apply_swish else 1)),
        bytes_accessed=int(n_pad * K_pad * in_item + K_pad * cout_p * in_item
                           + 3 * cout_p * 4 + n_pad * cout_p * out_item))

    kern = partial(_gemm_ln_kernel, cout_true=cout, apply_swish=apply_swish,
                   eps=eps)
    out = pl.pallas_call(
        kern,
        out_shape=jax.ShapeDtypeStruct((n_pad, cout_p), out_dtype),
        grid=(n_blocks,),
        in_specs=[
            pl.BlockSpec((tile_m, K_pad), lambda i: (i, 0)),
            pl.BlockSpec((K_pad, cout_p), lambda i: (0, 0)),    # resident
            pl.BlockSpec((3, cout_p), lambda i: (0, 0)),        # resident
        ],
        out_specs=pl.BlockSpec((tile_m, cout_p), lambda i: (i, 0)),
        compiler_params=pltpu.CompilerParams(
            dimension_semantics=("parallel",),
            vmem_limit_bytes=vmem_limit),
        cost_estimate=cost,
    )(patches, wk, pk)

    if n_pad != n_tok:
        out = out[:n_tok]
    # Rows are already (b, ho, wo) ordered; channels stay lane-padded (zeros).
    return out.reshape(B, Ho, Wo, cout_p), Ho, Wo


# --------------------------------------------------------------------------- #
# V2PatchEmbed params + forward
# --------------------------------------------------------------------------- #
def v2_patch_embed_init(key, in_chans, embed_dim, patch_size):
    """Deterministic synthetic parameters. Conv weights stored as HWIO."""
    stride1 = patch_size // 2
    k1 = stride1 + 1
    mid = embed_dim // 2
    keys = jax.random.split(key, 4)
    return {
        "w1": jax.random.normal(keys[0], (k1, k1, in_chans, mid), jnp.float32) * 0.05,
        "b1": jax.random.normal(keys[1], (mid,), jnp.float32) * 0.01,
        "g1": jnp.ones((mid,), jnp.float32),
        "beta1": jnp.zeros((mid,), jnp.float32),
        "w2": jax.random.normal(keys[2], (3, 3, mid, embed_dim), jnp.float32) * 0.05,
        "b2": jax.random.normal(keys[3], (embed_dim,), jnp.float32) * 0.01,
        "g2": jnp.ones((embed_dim,), jnp.float32),
        "beta2": jnp.zeros((embed_dim,), jnp.float32),
        "k1": k1,
        "s1": stride1,
    }


def v2_patch_embed_forward(params, x_nchw, scan_mode="default"):
    # Input is NCHW (PyTorch convention); converted to NHWC internally.
    assert scan_mode == "default"  # TODO(synk): 'zigzag' scan reorder not implemented
    x = jnp.transpose(x_nchw, (0, 2, 3, 1))  # NHWC

    # Stage 1: conv(k1, s1, pad=1) + LayerNorm(channel) + swish  (bf16 out).
    y1, H1, W1 = _conv_ln_stage(
        x, params["w1"], params["b1"], params["g1"], params["beta1"],
        k=params["k1"], stride=params["s1"], pad=1,
        apply_swish=True, out_dtype=jnp.bfloat16)

    # Stage 2: conv(3, 2, pad=1) + LayerNorm(channel), no activation (bf16 out).
    # y1 carries lane-padded channels (exact zeros); pad w2's input-channel dim
    # with zeros to match -- keep these two pads coupled.
    w2 = params["w2"]
    c1 = y1.shape[-1]
    if c1 != w2.shape[2]:
        w2 = jnp.pad(w2, ((0, 0), (0, 0), (0, c1 - w2.shape[2]), (0, 0)))
    y2, H2, W2 = _conv_ln_stage(
        y1, w2, params["b2"], params["g2"], params["beta2"],
        k=3, stride=2, pad=1, apply_swish=False, out_dtype=jnp.bfloat16)

    embed_dim = params["w2"].shape[-1]
    # flatten(2).transpose(1, 2): rows already (b, h2, w2) ordered.
    # TODO(synk): a fused consumer could keep the 128-padded channel dim and
    # bf16 dtype; slice + cast here for module-faithful output.
    tokens = y2.reshape(y2.shape[0], H2 * W2, y2.shape[-1])[:, :, :embed_dim]
    return tokens.astype(jnp.float32), (H2, W2)


# --------------------------------------------------------------------------- #
# Pure-JAX reference (mirrors the bf16-storage / f32-math numerics)
# --------------------------------------------------------------------------- #
def _ref_forward(params, x_nchw):
    def stage(x_nhwc, k, s, w, b, g, beta, swish):
        y = lax.conv_general_dilated(
            x_nhwc.astype(jnp.bfloat16), w.astype(jnp.bfloat16),
            window_strides=(s, s), padding=[(1, 1), (1, 1)],
            dimension_numbers=("NHWC", "HWIO", "NHWC"),
            preferred_element_type=jnp.float32) + b
        mean = jnp.mean(y, -1, keepdims=True)
        var = jnp.mean((y - mean) ** 2, -1, keepdims=True)
        y = (y - mean) * lax.rsqrt(var + 1e-5) * g + beta
        if swish:
            y = y * jax.nn.sigmoid(y)
        return y

    x = jnp.transpose(x_nchw, (0, 2, 3, 1))
    y1 = stage(x, params["k1"], params["s1"], params["w1"], params["b1"],
               params["g1"], params["beta1"], True).astype(jnp.bfloat16)
    y2 = stage(y1, 3, 2, params["w2"], params["b2"], params["g2"],
               params["beta2"], False)
    B, H2, W2, D = y2.shape
    return y2.reshape(B, H2 * W2, D), (H2, W2)


# --------------------------------------------------------------------------- #
if __name__ == "__main__":
    # Small config consistent with the module: img=16, patch=4 (=> conv1 k=3,s=2),
    # in_chans=4, embed_dim=32.
    B, C, Hin, Win = 2, 4, 16, 16
    embed_dim, patch_size = 32, 4

    key = jax.random.PRNGKey(0)
    k_x, k_p = jax.random.split(key)
    x = jax.random.normal(k_x, (B, C, Hin, Win), jnp.float32)
    params = v2_patch_embed_init(k_p, C, embed_dim, patch_size)

    tokens, (newH, newW) = v2_patch_embed_forward(params, x)
    tokens = jax.block_until_ready(tokens)

    ref_tokens, (rH, rW) = _ref_forward(params, x)
    assert tokens.shape == (B, newH * newW, embed_dim), tokens.shape
    assert (newH, newW) == (rH, rW)
    max_err = jnp.max(jnp.abs(tokens - ref_tokens))
    assert jnp.allclose(tokens, ref_tokens, atol=2e-2, rtol=2e-2), max_err

    print("KERNEL_OK")
</pallas_src>

<mosaic_0001>
module attributes {stable_mosaic.version = 11 : i64} {
  func.func @_gemm_ln_kernel(%arg0: i32, %arg1: memref<64x128xbf16, #tpu.memory_space<vmem>>, %arg2: memref<128x128xbf16, #tpu.memory_space<vmem>>, %arg3: memref<3x128xf32, #tpu.memory_space<vmem>>, %arg4: memref<64x128xbf16, #tpu.memory_space<vmem>>) attributes {dimension_semantics = [#tpu.dimension_semantics<parallel>], iteration_bounds = array<i64: 2>, scalar_prefetch = 0 : i64, scratch_operands = 0 : i64, tpu.core_type = #tpu.core_type<tc>, window_params = [{transform_indices = @transform_0, window_bounds = array<i64: 64, 128>}, {pipeline_mode = #tpu.pipeline_mode<synchronous>, transform_indices = @transform_1, window_bounds = array<i64: 128, 128>}, {pipeline_mode = #tpu.pipeline_mode<synchronous>, transform_indices = @transform_2, window_bounds = array<i64: 3, 128>}, {transform_indices = @transform_3, window_bounds = array<i64: 64, 128>}]} {
    %c0 = arith.constant 0 : index
    %c0_0 = arith.constant 0 : index
    %0 = vector.load %arg1[%c0, %c0_0] : memref<64x128xbf16, #tpu.memory_space<vmem>>, vector<64x128xbf16>
    %c0_1 = arith.constant 0 : index
    %c0_2 = arith.constant 0 : index
    %1 = vector.load %arg2[%c0_1, %c0_2] : memref<128x128xbf16, #tpu.memory_space<vmem>>, vector<128x128xbf16>
    %cst = arith.constant dense<0.000000e+00> : vector<64x128xf32>
    %2 = tpu.matmul %0, %1, %cst {dimension_numbers = #tpu.dot_dimension_numbers<[1], [0], [0], [1], [0, 0, 1, 1], [], []>} : vector<64x128xbf16>, vector<128x128xbf16>, vector<64x128xf32> -> vector<64x128xf32>
    %c0_3 = arith.constant 0 : index
    %c0_4 = arith.constant 0 : index
    %3 = vector.load %arg3[%c0_3, %c0_4] : memref<3x128xf32, #tpu.memory_space<vmem>>, vector<3x128xf32>
    %4 = vector.extract_strided_slice %3 {offsets = [0, 0], sizes = [1, 128], strides = [1, 1]} : vector<3x128xf32> to vector<1x128xf32>
    %5 = vector.broadcast %4 : vector<1x128xf32> to vector<64x128xf32>
    %6 = arith.addf %2, %5 : vector<64x128xf32>
    %7 = tpu.iota {dimensions = array<i32: 1>} : vector<1x128xi32>
    %c16_i32 = arith.constant 16 : i32
    %8 = vector.broadcast %c16_i32 : i32 to vector<1x128xi32>
    %9 = arith.cmpi slt, %7, %8 : vector<1x128xi32>
    %cst_5 = arith.constant 0.000000e+00 : f32
    %10 = vector.shape_cast %9 : vector<1x128xi1> to vector<1x128xi1>
    %11 = vector.broadcast %10 : vector<1x128xi1> to vector<64x128xi1>
    %12 = vector.broadcast %cst_5 : f32 to vector<64x128xf32>
    %13 = arith.select %11, %6, %12 : vector<64x128xi1>, vector<64x128xf32>
    %cst_6 = arith.constant dense<0.000000e+00> : vector<64xf32>
    %14 = vector.multi_reduction <add>, %13, %cst_6 [1] : vector<64x128xf32> to vector<64xf32>
    %15 = vector.shape_cast %14 : vector<64xf32> to vector<64x1xf32>
    %cst_7 = arith.constant 6.250000e-02 : f32
    %16 = vector.broadcast %cst_7 : f32 to vector<64x1xf32>
    %17 = arith.mulf %15, %16 : vector<64x1xf32>
    %18 = vector.broadcast %17 : vector<64x1xf32> to vector<64x128xf32>
    %19 = arith.subf %6, %18 : vector<64x128xf32>
    %cst_8 = arith.constant 0.000000e+00 : f32
    %20 = vector.shape_cast %9 : vector<1x128xi1> to vector<1x128xi1>
    %21 = vector.broadcast %20 : vector<1x128xi1> to vector<64x128xi1>
    %22 = vector.broadcast %cst_8 : f32 to vector<64x128xf32>
    %23 = arith.select %21, %19, %22 : vector<64x128xi1>, vector<64x128xf32>
    %24 = arith.mulf %23, %23 : vector<64x128xf32>
    %cst_9 = arith.constant dense<0.000000e+00> : vector<64xf32>
    %25 = vector.multi_reduction <add>, %24, %cst_9 [1] : vector<64x128xf32> to vector<64xf32>
    %26 = vector.shape_cast %25 : vector<64xf32> to vector<64x1xf32>
    %cst_10 = arith.constant 6.250000e-02 : f32
    %27 = vector.broadcast %cst_10 : f32 to vector<64x1xf32>
    %28 = arith.mulf %26, %27 : vector<64x1xf32>
    %cst_11 = arith.constant 9.99999974E-6 : f32
    %29 = vector.broadcast %cst_11 : f32 to vector<64x1xf32>
    %30 = arith.addf %28, %29 : vector<64x1xf32>
    %31 = math.rsqrt %30 : vector<64x1xf32>
    %32 = vector.broadcast %31 : vector<64x1xf32> to vector<64x128xf32>
    %33 = arith.mulf %19, %32 : vector<64x128xf32>
    %34 = vector.extract_strided_slice %3 {offsets = [1, 0], sizes = [1, 128], strides = [1, 1]} : vector<3x128xf32> to vector<1x128xf32>
    %35 = vector.broadcast %34 : vector<1x128xf32> to vector<64x128xf32>
    %36 = arith.mulf %33, %35 : vector<64x128xf32>
    %37 = vector.extract_strided_slice %3 {offsets = [2, 0], sizes = [1, 128], strides = [1, 1]} : vector<3x128xf32> to vector<1x128xf32>
    %38 = vector.broadcast %37 : vector<1x128xf32> to vector<64x128xf32>
    %39 = arith.addf %36, %38 : vector<64x128xf32>
    %40 = arith.negf %39 : vector<64x128xf32>
    %41 = math.exp %40 : vector<64x128xf32>
    %cst_12 = arith.constant 1.000000e+00 : f32
    %42 = vector.broadcast %cst_12 : f32 to vector<64x128xf32>
    %43 = arith.addf %42, %41 : vector<64x128xf32>
    %44 = arith.divf %42, %43 : vector<64x128xf32>
    %45 = arith.mulf %39, %44 : vector<64x128xf32>
    %46 = arith.truncf %45 : vector<64x128xf32> to vector<64x128xbf16>
    %c0_13 = arith.constant 0 : index
    %c0_14 = arith.constant 0 : index
    %47 = vector.load %arg4[%c0_13, %c0_14] : memref<64x128xbf16, #tpu.memory_space<vmem>>, vector<64x128xbf16>
    tpu.vector_store %arg4[%c0_13, %c0_14], %46 {strides = array<i32>} : memref<64x128xbf16, #tpu.memory_space<vmem>>, vector<64x128xbf16>,
    return
  }
  func.func @transform_0(%arg0: i32) -> (i32, i32) {
    %c0_i32 = arith.constant 0 : i32
    %c0_i32_0 = arith.constant 0 : i32
    return %arg0, %c0_i32 : i32, i32
  }
  func.func @transform_1(%arg0: i32) -> (i32, i32) {
    %c0_i32 = arith.constant 0 : i32
    %c0_i32_0 = arith.constant 0 : i32
    %c0_i32_1 = arith.constant 0 : i32
    return %c0_i32, %c0_i32_0 : i32, i32
  }
  func.func @transform_2(%arg0: i32) -> (i32, i32) {
    %c0_i32 = arith.constant 0 : i32
    %c0_i32_0 = arith.constant 0 : i32
    %c0_i32_1 = arith.constant 0 : i32
    return %c0_i32, %c0_i32_0 : i32, i32
  }
  func.func @transform_3(%arg0: i32) -> (i32, i32) {
    %c0_i32 = arith.constant 0 : i32
    %c0_i32_0 = arith.constant 0 : i32
    return %arg0, %c0_i32 : i32, i32
  }
}

</mosaic_0001>

<llo_original>
// kernel: tpu_custom_call.1
$region0: #{tpu_custom_call.1}
  #allocation0 [shape = 'u32[]', space=smem, size = 0x4, offset = 0x4, fixed_abs, tag = 'smem constant byte address 0x4 - core index']
  #allocation1 [shape = 'u32[144,128]{1,0:T(1,128)}', space=vmem, size = 0x12000, scoped, tag = 'internal scratch']
  %s0 = inlined_call_operand.hbm [shape: bf16[128,128], index: 0, kind: input, shape index: {}]
  %s1 = inlined_call_operand.hbm [shape: bf16[128,128], index: 1, kind: input, shape index: {}]
  %s2 = inlined_call_operand.hbm [shape: f32[3,128], index: 2, kind: input, shape index: {}]
  %s3 = inlined_call_operand.hbm [shape: bf16[128,128], index: 3, kind: output, shape index: {}]
  %s4 = sld [smem:[#allocation0]]
  $region57: #{tpu_custom_call.1} parent=0
    _
  %s6 = ssub.s32 1, %s4
  %s7 = scalar_select 0, %s6, %s4
  $region1: #{tpu_custom_call.1} parent=0
    #allocation2 [shape = 'u8[32768]{0}', space=vmem, size = 0x8000, scoped, tag = 'input window, operand 0']
    #allocation3 [shape = 's32[2]{0}', space=sflag, size = 0x8, scoped, tag = 'scoped memory for tpu_custom_call.1']
    #allocation4 [shape = 's32[2]{0}', space=sflag, size = 0x8, scoped, tag = 'scoped memory for tpu_custom_call.1']
    #allocation5 [shape = 'u8[32768]{0}', space=vmem, size = 0x8000, scoped, tag = 'input window, operand 1, single buffered']
    #allocation6 [shape = 's32[1]{0}', space=sflag, size = 0x4, scoped, tag = 'scoped memory for tpu_custom_call.1']
    #allocation7 [shape = 'u8[2048]{0}', space=vmem, size = 0x800, scoped, tag = 'input window, operand 2, single buffered']
    #allocation8 [shape = 'u8[32768]{0}', space=vmem, size = 0x8000, scoped, tag = 'output window, operand 0']
    %8 = vsyncpa [#allocation3], 0
    %s9 = scalar_lea.sflag [#allocation3], 1
    %10 = vsyncpa %s9, 0
    %11 = vsyncpa [#allocation6], 0
    %12 = vsyncpa [#allocation4], 0
    %s13 = scalar_lea.sflag [#allocation4], 1
    %14 = vsyncpa %s13, 0
    loop: start=0, step=1, limit=4
    $region2: #{tpu_custom_call.1} parent=1 // loop_pre_header
      _
    $region3: #{tpu_custom_call.1} parent=1 // loop_header
      %s16 = sphi 0, %s20
      %p17 = scmp.ge.s32.totalorder %s16, 4
      %s26 = sphi 0, %s28
      %s29 = sphi 0, %s26
      %s30 = sphi 0, %s29
      %s46 = sphi 0, %s30
      %s50 = sphi 0, %s50
      %s52 = sphi 0, %s50
      %s53 = sphi 0, %s52
      %s67 = sphi 0, %s53
      %s71 = sphi 0, %s71
      %s73 = sphi 0, %s71
      %s74 = sphi 0, %s73
      %s88 = sphi 0, %s74
      %s94 = sphi 0, %s96
      %s97 = sphi 0, %s94
      %s98 = sphi 0, %s97
      %s114 = sphi 0, %s98
    $region4: #{tpu_custom_call.1} parent=1 // loop_header_branch
      %19 = sbr.rel (%p17) target = $region8
    $region5: #{tpu_custom_call.1} parent=1 // loop_body
      %s21 = ssub.s32 %s16, 1
      %s22 = ssub.s32 %s16, 2
      %s23 = sadd.s32 %s16, 1
      %s24 = ssub.s32 %s16, %s23
      %p25 = scmp.eq.s32.totalorder %s24, 0
      %s27 = sadd.s32 %s26, 1
      %s28 = scalar_select %p25, %s26, %s27
      %p31 = pneg %p25
      %p32 = scmp.eq.s32.totalorder %s16, 1
      %p33 = por %p31, %p32
      %p34 = scmp.ne.s32.totalorder %s26, %s29
      %p35 = scmp.eq.s32.totalorder %s16, 0
      %p36 = por %p34, %p35
      %p37 = scmp.ne.s32.totalorder %s26, %s29
      %p38 = scmp.eq.s32.totalorder %s21, 1
      %p39 = por %p37, %p38
      %p40 = scmp.ne.s32.totalorder %s29, %s30
      %p41 = scmp.eq.s32.totalorder %s21, 0
      %p42 = por %p40, %p41
      %p43 = scmp.ne.s32.totalorder %s29, %s30
      %p44 = scmp.eq.s32.totalorder %s22, 1
      %p45 = por %p43, %p44
      %p47 = scmp.ne.s32.totalorder %s30, %s46
      %p48 = scmp.eq.s32.totalorder %s22, 0
      %p49 = por %p47, %p48
      %s51 = sadd.s32 %s50, 1
      %p54 = scmp.eq.s32.totalorder %s16, 1
      %p55 = scmp.ne.s32.totalorder %s50, %s52
      %p56 = scmp.eq.s32.totalorder %s16, 0
      %p57 = por %p55, %p56
      %p58 = scmp.ne.s32.totalorder %s50, %s52
      %p59 = scmp.eq.s32.totalorder %s21, 1
      %p60 = por %p58, %p59
      %p61 = scmp.ne.s32.totalorder %s52, %s53
      %p62 = scmp.eq.s32.totalorder %s21, 0
      %p63 = por %p61, %p62
      %p64 = scmp.ne.s32.totalorder %s52, %s53
      %p65 = scmp.eq.s32.totalorder %s22, 1
      %p66 = por %p64, %p65
      %p68 = scmp.ne.s32.totalorder %s53, %s67
      %p69 = scmp.eq.s32.totalorder %s22, 0
      %p70 = por %p68, %p69
      %s72 = sadd.s32 %s71, 1
      %p75 = scmp.eq.s32.totalorder %s16, 1
      %p76 = scmp.ne.s32.totalorder %s71, %s73
      %p77 = scmp.eq.s32.totalorder %s16, 0
      %p78 = por %p76, %p77
      %p79 = scmp.ne.s32.totalorder %s71, %s73
      %p80 = scmp.eq.s32.totalorder %s21, 1
      %p81 = por %p79, %p80
      %p82 = scmp.ne.s32.totalorder %s73, %s74
      %p83 = scmp.eq.s32.totalorder %s21, 0
      %p84 = por %p82, %p83
      %p85 = scmp.ne.s32.totalorder %s73, %s74
      %p86 = scmp.eq.s32.totalorder %s22, 1
      %p87 = por %p85, %p86
      %p89 = scmp.ne.s32.totalorder %s74, %s88
      %p90 = scmp.eq.s32.totalorder %s22, 0
      %p91 = por %p89, %p90
      %s92 = ssub.s32 %s16, %s23
      %p93 = scmp.eq.s32.totalorder %s92, 0
      %s95 = sadd.s32 %s94, 1
      %s96 = scalar_select %p93, %s94, %s95
      %p99 = pneg %p93
      %p100 = scmp.eq.s32.totalorder %s16, 1
      %p101 = por %p99, %p100
      %p102 = scmp.ne.s32.totalorder %s94, %s97
      %p103 = scmp.eq.s32.totalorder %s16, 0
      %p104 = por %p102, %p103
      %p105 = scmp.ne.s32.totalorder %s94, %s97
      %p106 = scmp.eq.s32.totalorder %s21, 1
      %p107 = por %p105, %p106
      %p108 = scmp.ne.s32.totalorder %s97, %s98
      %p109 = scmp.eq.s32.totalorder %s21, 0
      %p110 = por %p108, %p109
      %p111 = scmp.ne.s32.totalorder %s97, %s98
      %p112 = scmp.eq.s32.totalorder %s22, 1
      %p113 = por %p111, %p112
      %p115 = scmp.ne.s32.totalorder %s98, %s114
      %p116 = scmp.eq.s32.totalorder %s22, 0
      %p117 = por %p115, %p116
      %p118 = scmp.le.s32.totalorder 1, %s16
      %p119 = scmp.lt.s32.totalorder %s16, 3
      %p120 = pnand %p118, %p119
      %p121 = pneg %p120
      // Predicated region
      $region9: #{tpu_custom_call.1} parent=5 // pred_check
        _
      $region10: #{tpu_custom_call.1} parent=5 // pred_check_branch
        %123 = sbr.rel (%p120) target = $region12
      $region11: #{tpu_custom_call.1} parent=5 // pred_region
        %s124 = ssub.s32 %s16, 1
        // Predicated region
        $region13: #{tpu_custom_call.1} parent=11 // pred_check
          %p125 = pneg %p63
        $region14: #{tpu_custom_call.1} parent=11 // pred_check_branch
          %127 = sbr.rel (%p125) target = $region16
        $region15: #{tpu_custom_call.1} parent=11 // pred_region
          %s129 = ssub.s32 1024, 1024
          %130 = vsyncadd [#allocation6], %s129
          %s131 = sshll.u32 [#allocation5], 4
          %s132 = int_to_ptr.vmem [resolvable:$true] %s131
          %137 = dma.hbm_to_vmem [thread:$0]  %s1, 1024, %s132, [#allocation6], 64, 64, 4
        $region16: #{tpu_custom_call.1} parent=11 // pred_fallthru
          _
        // Predicated region
        $region17: #{tpu_custom_call.1} parent=11 // pred_check
          %p138 = pneg %p84
        $region18: #{tpu_custom_call.1} parent=11 // pred_check_branch
          %140 = sbr.rel (%p138) target = $region20
        $region19: #{tpu_custom_call.1} parent=11 // pred_region
          %s142 = ssub.s32 64, 64
          %143 = vsyncadd [#allocation6], %s142
          %s145 = sshll.u32 [#allocation7], 4
          %s146 = int_to_ptr.vmem [resolvable:$true] %s145
          %148 = dma.hbm_to_vmem [thread:$0]  %s2, 64, %s146, [#allocation6]
        $region20: #{tpu_custom_call.1} parent=11 // pred_fallthru
          _
      $region12: #{tpu_custom_call.1} parent=5 // pred_fallthru
        _
      %p149 = scmp.lt.s32.totalorder %s16, 2
      // Predicated region
      $region21: #{tpu_custom_call.1} parent=5 // pred_check
        %p150 = pneg %p149
      $region22: #{tpu_custom_call.1} parent=5 // pred_check_branch
        %152 = sbr.rel (%p150) target = $region24
      $region23: #{tpu_custom_call.1} parent=5 // pred_region
        // Predicated region
        $region25: #{tpu_custom_call.1} parent=23 // pred_check
          %p153 = pneg %p36
        $region26: #{tpu_custom_call.1} parent=23 // pred_check_branch
          %155 = sbr.rel (%p153) target = $region28
        $region27: #{tpu_custom_call.1} parent=23 // pred_region
          %s156 = sand.u32 %s26, 1
          %s157 = scalar_lea.sflag [#allocation3], %s156
          %s158 = sand.u32 %s26, 1
          %s159 = smul.addr %s158, 32
          %s160 = scalar_lea.vmem [#allocation2], %s159
          %s161 = smul.u32 8, %s16
          %s163 = ssub.s32 512, 512
          %164 = vsyncadd %s157, %s163
          %s165 = smul.addr %s161, 64
          %s166 = scalar_lea.hbm %s0, %s165
          %s167 = sshll.u32 %s160, 4
          %s168 = int_to_ptr.vmem [resolvable:$true] %s167
          %173 = dma.hbm_to_vmem [thread:$0]  %s166, 512, %s168, %s157, 64, 64, 4
        $region28: #{tpu_custom_call.1} parent=23 // pred_fallthru
          _
      $region24: #{tpu_custom_call.1} parent=5 // pred_fallthru
        _
      %p174 = scmp.le.s32.totalorder 1, %s16
      %p175 = scmp.lt.s32.totalorder %s16, 3
      %p176 = pnand %p174, %p175
      %p177 = pneg %p176
      // Predicated region
      $region29: #{tpu_custom_call.1} parent=5 // pred_check
        _
      $region30: #{tpu_custom_call.1} parent=5 // pred_check_branch
        %179 = sbr.rel (%p176) target = $region32
      $region31: #{tpu_custom_call.1} parent=5 // pred_region
        %s180 = ssub.s32 %s16, 1
        %s181 = sand.u32 %s29, 1
        %s182 = scalar_lea.sflag [#allocation3], %s181
        %s183 = sand.u32 %s29, 1
        %s184 = smul.addr %s183, 32
        %s185 = scalar_lea.vmem [#allocation2], %s184
        // Predicated region
        $region33: #{tpu_custom_call.1} parent=31 // pred_check
          %p186 = pneg %p42
        $region34: #{tpu_custom_call.1} parent=31 // pred_check_branch
          %188 = sbr.rel (%p186) target = $region36
        $region35: #{tpu_custom_call.1} parent=31 // pred_region
          %189 = dma.done %s182, 512
        $region36: #{tpu_custom_call.1} parent=31 // pred_fallthru
          _
        // Predicated region
        $region37: #{tpu_custom_call.1} parent=31 // pred_check
          %p190 = pneg %p63
        $region38: #{tpu_custom_call.1} parent=31 // pred_check_branch
          %192 = sbr.rel (%p190) target = $region40
        $region39: #{tpu_custom_call.1} parent=31 // pred_region
          %193 = dma.done [#allocation6], 1024
        $region40: #{tpu_custom_call.1} parent=31 // pred_fallthru
          _
        // Predicated region
        $region41: #{tpu_custom_call.1} parent=31 // pred_check
          %p194 = pneg %p84
        $region42: #{tpu_custom_call.1} parent=31 // pred_check_branch
          %196 = sbr.rel (%p194) target = $region44
        $region43: #{tpu_custom_call.1} parent=31 // pred_region
          %197 = dma.done [#allocation6], 64
        $region44: #{tpu_custom_call.1} parent=31 // pred_fallthru
          _
        %s198 = sand.u32 %s29, 1
        %s199 = scalar_lea.sflag [#allocation3], %s198
        %s200 = sand.u32 %s29, 1
        %s201 = smul.addr %s200, 32
        %s202 = scalar_lea.vmem [#allocation2], %s201
        %p203 = pneg %p42
        %p204 = pneg %p39
        %p205 = pneg %p63
        %p206 = pneg %p60
        %p207 = pneg %p84
        %p208 = pneg %p81
        %p209 = pneg %p110
        %p210 = pneg %p107
        %s211 = sand.u32 %s97, 1
        %s212 = scalar_lea.sflag [#allocation4], %s211
        %s213 = sand.u32 %s97, 1
        %s214 = smul.addr %s213, 32
        %s215 = scalar_lea.vmem [#allocation8], %s214
        %s216 = smul.u32 8, %s21
        %s217 = smul.u32 8, %s21
        %v219 = vld [vmem:[%s185] sm:$0xf]
        %v220 = vld [vmem:[%s185 + $0x4] sm:$0xf]
        %v221 = vld [vmem:[%s185 + $0x8] sm:$0xf]
        %v222 = vld [vmem:[%s185 + $0xc] sm:$0xf]
        %v223 = vld [vmem:[%s185 + $0x10] sm:$0xf]
        %v224 = vld [vmem:[%s185 + $0x14] sm:$0xf]
        %v225 = vld [vmem:[%s185 + $0x18] sm:$0xf]
        %v226 = vld [vmem:[%s185 + $0x1c] sm:$0xf]
        %v227 = vld [vmem:[#allocation5] sm:$0xf]
        %v228 = vld [vmem:[#allocation5 + $0x4] sm:$0xf]
        %v229 = vld [vmem:[#allocation5 + $0x8] sm:$0xf]
        %v230 = vld [vmem:[#allocation5 + $0xc] sm:$0xf]
        %v231 = vld [vmem:[#allocation5 + $0x10] sm:$0xf]
        %v232 = vld [vmem:[#allocation5 + $0x14] sm:$0xf]
        %v233 = vld [vmem:[#allocation5 + $0x18] sm:$0xf]
        %v234 = vld [vmem:[#allocation5 + $0x1c] sm:$0xf]
        %v235 = vld [vmem:[#allocation5 + $0x20] sm:$0xf]
        %v236 = vld [vmem:[#allocation5 + $0x24] sm:$0xf]
        %v237 = vld [vmem:[#allocation5 + $0x28] sm:$0xf]
        %v238 = vld [vmem:[#allocation5 + $0x2c] sm:$0xf]
        %v239 = vld [vmem:[#allocation5 + $0x30] sm:$0xf]
        %v240 = vld [vmem:[#allocation5 + $0x34] sm:$0xf]
        %v241 = vld [vmem:[#allocation5 + $0x38] sm:$0xf]
        %v242 = vld [vmem:[#allocation5 + $0x3c] sm:$0xf]
        %v243 = vld [vmem:[#allocation7] sm:$0x7]
        %v244 = vlaneseq
        %v245 = vshrl.u32 %v244, 7
        %v246 = vsub.s32 0, %v245
        %v247 = vrot.slane %v243, %v246
        %v256 = vunpack.c.l.b16 %v219
        %v257 = vunpack.c.l.b16 %v220
        %v258 = vunpack.c.l.b16 %v221
        %v259 = vunpack.c.l.b16 %v222
        %v260 = vunpack.c.l.b16 %v223
        %v261 = vunpack.c.l.b16 %v224
        %v262 = vunpack.c.l.b16 %v225
        %v263 = vunpack.c.l.b16 %v226
        %v264 = vpack.c.b16 %v257, %v256
        %v265 = vpack.c.b16 %v259, %v258
        %v266 = vpack.c.b16 %v261, %v260
        %v267 = vpack.c.b16 %v263, %v262
        %v288 = vunpack.c.l.b16 %v227
        %v289 = vunpack.c.l.b16 %v228
        %v290 = vunpack.c.l.b16 %v229
        %v291 = vunpack.c.l.b16 %v230
        %v292 = vunpack.c.l.b16 %v231
        %v293 = vunpack.c.l.b16 %v232
        %v294 = vunpack.c.l.b16 %v233
        %v295 = vunpack.c.l.b16 %v234
        %v296 = vunpack.c.l.b16 %v235
        %v297 = vunpack.c.l.b16 %v236
        %v298 = vunpack.c.l.b16 %v237
        %v299 = vunpack.c.l.b16 %v238
        %v300 = vunpack.c.l.b16 %v239
        %v301 = vunpack.c.l.b16 %v240
        %v302 = vunpack.c.l.b16 %v241
        %v303 = vunpack.c.l.b16 %v242
        %v304 = vpack.c.b16 %v289, %v288
        %v305 = vpack.c.b16 %v291, %v290
        %v306 = vpack.c.b16 %v293, %v292
        %v307 = vpack.c.b16 %v295, %v294
        %v308 = vpack.c.b16 %v297, %v296
        %v309 = vpack.c.b16 %v299, %v298
        %v310 = vpack.c.b16 %v301, %v300
        %v311 = vpack.c.b16 %v303, %v302
        %320 = vmatprep.subr.bf16.mxu0 0
        %321 = vmatpush1.bf16.msra.mxu0 %v311
        %322 = vmatprep.subr.bf16.mxu0 0
        %323 = vmatpush1.bf16.msra.mxu0 %v310
        %324 = vmatprep.subr.bf16.mxu0 0
        %325 = vmatpush1.bf16.msra.mxu0 %v309
        %326 = vmatprep.subr.bf16.mxu0 0
        %327 = vmatpush1.bf16.msra.mxu0 %v308
        %328 = vmatprep.subr.bf16.mxu0 0
        %329 = vmatpush1.bf16.msra.mxu0 %v307
        %330 = vmatprep.subr.bf16.mxu0 0
        %331 = vmatpush1.bf16.msra.mxu0 %v306
        %332 = vmatprep.subr.bf16.mxu0 0
        %333 = vmatpush1.bf16.msra.mxu0 %v305
        %334 = vmatprep.subr.bf16.mxu0 0
        %335 = vmatpush1.bf16.msra.mxu0 %v304
        %336 = vmatprep.subr.bf16.mxu0 0
        %337 = vmatpush2.bf16.msra.mxu0 0
        %338 = vmatprep.subr.bf16.mxu0 0
        %339 = vmatpush2.bf16.msra.mxu0 0
        %340 = vmatprep.subr.bf16.mxu0 0
        %341 = vmatpush2.bf16.msra.mxu0 0
        %342 = vmatprep.subr.bf16.mxu0 0
        %343 = vmatpush2.bf16.msra.mxu0 0
        %344 = vmatprep.subr.bf16.mxu0 0
        %345 = vmatpush2.bf16.msra.mxu0 0
        %346 = vmatprep.subr.bf16.mxu0 0
        %347 = vmatpush2.bf16.msra.mxu0 0
        %348 = vmatprep.subr.bf16.mxu0 0
        %349 = vmatpush2.bf16.msra.mxu0 0
        %350 = vmatprep.subr.bf16.mxu0 0
        %351 = vmatpush2.bf16.msra.mxu0 0
        %352 = vmatprep.mubr.bf16.mxu0 0
        %353 = vmatmul.mubr.bf16.gmra.mxu0 %v264
        %v354 = vpop.f32.mrf.mxu0
        %v355 = vadd.f32 %v247, %v354
        %v356 = vpop.f32.mrf.mxu0
        %v357 = vpop.f32.mrf.mxu0
        %v358 = vadd.f32 %v247, %v357
        %v359 = vpop.f32.mrf.mxu0
        %360 = vmatprep.mubr.bf16.mxu0 0
        %361 = vmatmul.mubr.bf16.gmra.mxu0 %v265
        %v362 = vpop.f32.mrf.mxu0
        %v363 = vadd.f32 %v247, %v362
        %v364 = vpop.f32.mrf.mxu0
        %v365 = vpop.f32.mrf.mxu0
        %v366 = vadd.f32 %v247, %v365
        %v367 = vpop.f32.mrf.mxu0
        %368 = vmatprep.mubr.bf16.mxu0 0
        %369 = vmatmul.mubr.bf16.gmra.mxu0 %v266
        %v370 = vpop.f32.mrf.mxu0
        %v371 = vadd.f32 %v247, %v370
        %v372 = vpop.f32.mrf.mxu0
        %v373 = vpop.f32.mrf.mxu0
        %v374 = vadd.f32 %v247, %v373
        %v375 = vpop.f32.mrf.mxu0
        %376 = vmatprep.mubr.bf16.mxu0 0
        %377 = vmatmul.mubr.bf16.gmra.mxu0 %v267
        %v378 = vpop.f32.mrf.mxu0
        %v379 = vadd.f32 %v247, %v378
        %v380 = vpop.f32.mrf.mxu0
        %v381 = vpop.f32.mrf.mxu0
        %v382 = vadd.f32 %v247, %v381
        %v383 = vpop.f32.mrf.mxu0
        %384 = vdwg.mxu0
        %v385 = vlaneseq
        %v386 = vand.u32 %v385, 127
        %vm387 = vcmp.lt.s32.totalorder %v386, 16
        %v388 = vsel %vm387, 1, 0
        %vm389 = vcmp.eq.s32.totalorder %v388, 1
        %v390 = vsel %vm389, %v355, 0.0
        %v391 = vsel %vm389, %v358, 0.0
        %v392 = vsel %vm389, %v363, 0.0
        %v393 = vsel %vm389, %v366, 0.0
        %v394 = vsel %vm389, %v371, 0.0
        %v395 = vsel %vm389, %v374, 0.0
        %v396 = vsel %vm389, %v379, 0.0
        %v397 = vsel %vm389, %v382, 0.0
        %398 = vadd.xlane.f32.xlu0 %v390
        %v399 = vpop.xlane.xlu0 %398
        %400 = vadd.xlane.f32.xlu0 %v391
        %v401 = vpop.xlane.xlu0 %400
        %402 = vadd.xlane.f32.xlu0 %v392
        %v403 = vpop.xlane.xlu0 %402
        %404 = vadd.xlane.f32.xlu0 %v393
        %v405 = vpop.xlane.xlu0 %404
        %406 = vadd.xlane.f32.xlu0 %v394
        %v407 = vpop.xlane.xlu0 %406
        %408 = vadd.xlane.f32.xlu0 %v395
        %v409 = vpop.xlane.xlu0 %408
        %410 = vadd.xlane.f32.xlu0 %v396
        %v411 = vpop.xlane.xlu0 %410
        %412 = vadd.xlane.f32.xlu0 %v397
        %v413 = vpop.xlane.xlu0 %412
        %v414 = vmul.f32 %v399, 0.0625
        %v415 = vmul.f32 %v401, 0.0625
        %v416 = vmul.f32 %v403, 0.0625
        %v417 = vmul.f32 %v405, 0.0625
        %v418 = vmul.f32 %v407, 0.0625
        %v419 = vmul.f32 %v409, 0.0625
        %v420 = vmul.f32 %v411, 0.0625
        %v421 = vmul.f32 %v413, 0.0625
        %v422 = vsub.f32 %v355, %v414
        %v423 = vsub.f32 %v358, %v415
        %v424 = vsub.f32 %v363, %v416
        %v425 = vsub.f32 %v366, %v417
        %v426 = vsub.f32 %v371, %v418
        %v427 = vsub.f32 %v374, %v419
        %v428 = vsub.f32 %v379, %v420
        %v429 = vsub.f32 %v382, %v421
        %v430 = vsel %vm389, %v422, 0.0
        %v431 = vsel %vm389, %v423, 0.0
        %v432 = vsel %vm389, %v424, 0.0
        %v433 = vsel %vm389, %v425, 0.0
        %v434 = vsel %vm389, %v426, 0.0
        %v435 = vsel %vm389, %v427, 0.0
        %v436 = vsel %vm389, %v428, 0.0
        %v437 = vsel %vm389, %v429, 0.0
        %v438 = vmul.f32 %v430, %v430
        %v439 = vmul.f32 %v431, %v431
        %v440 = vmul.f32 %v432, %v432
        %v441 = vmul.f32 %v433, %v433
        %v442 = vmul.f32 %v434, %v434
        %v443 = vmul.f32 %v435, %v435
        %v444 = vmul.f32 %v436, %v436
        %v445 = vmul.f32 %v437, %v437
        %446 = vadd.xlane.f32.xlu0 %v438
        %v447 = vpop.xlane.xlu0 %446
        %448 = vadd.xlane.f32.xlu0 %v439
        %v449 = vpop.xlane.xlu0 %448
        %450 = vadd.xlane.f32.xlu0 %v440
        %v451 = vpop.xlane.xlu0 %450
        %452 = vadd.xlane.f32.xlu0 %v441
        %v453 = vpop.xlane.xlu0 %452
        %454 = vadd.xlane.f32.xlu0 %v442
        %v455 = vpop.xlane.xlu0 %454
        %456 = vadd.xlane.f32.xlu0 %v443
        %v457 = vpop.xlane.xlu0 %456
        %458 = vadd.xlane.f32.xlu0 %v444
        %v459 = vpop.xlane.xlu0 %458
        %460 = vadd.xlane.f32.xlu0 %v445
        %v461 = vpop.xlane.xlu0 %460
        %v462 = vmul.f32 %v447, 0.0625
        %v463 = vmul.f32 %v449, 0.0625
        %v464 = vmul.f32 %v451, 0.0625
        %v465 = vmul.f32 %v453, 0.0625
        %v466 = vmul.f32 %v455, 0.0625
        %v467 = vmul.f32 %v457, 0.0625
        %v468 = vmul.f32 %v459, 0.0625
        %v469 = vmul.f32 %v461, 0.0625
        %v470 = vadd.f32 %v462, 1e-05
        %v471 = vadd.f32 %v463, 1e-05
        %v472 = vadd.f32 %v464, 1e-05
        %v473 = vadd.f32 %v465, 1e-05
        %v474 = vadd.f32 %v466, 1e-05
        %v475 = vadd.f32 %v467, 1e-05
        %v476 = vadd.f32 %v468, 1e-05
        %v477 = vadd.f32 %v469, 1e-05
        %v478 = vrsqrt.pop %v470
        %v479 = vrsqrt.pop %v471
        %v480 = vrsqrt.pop %v472
        %v481 = vrsqrt.pop %v473
        %v482 = vrsqrt.pop %v474
        %v483 = vrsqrt.pop %v475
        %v484 = vrsqrt.pop %v476
        %v485 = vrsqrt.pop %v477
        %v486 = vmul.f32 %v422, %v478
        %v487 = vmul.f32 %v423, %v479
        %v488 = vmul.f32 %v424, %v480
        %v489 = vmul.f32 %v425, %v481
        %v490 = vmul.f32 %v426, %v482
        %v491 = vmul.f32 %v427, %v483
        %v492 = vmul.f32 %v428, %v484
        %v493 = vmul.f32 %v429, %v485
        %v494 = vlaneseq
        %v495 = vshrl.u32 %v494, 7
        %v496 = vsub.s32 1, %v495
        %v497 = vrot.slane %v243, %v496
        %v498 = vmul.f32 %v486, %v497
        %v499 = vmul.f32 %v487, %v497
        %v500 = vmul.f32 %v488, %v497
        %v501 = vmul.f32 %v489, %v497
        %v502 = vmul.f32 %v490, %v497
        %v503 = vmul.f32 %v491, %v497
        %v504 = vmul.f32 %v492, %v497
        %v505 = vmul.f32 %v493, %v497
        %v506 = vlaneseq
        %v507 = vshrl.u32 %v506, 7
        %v508 = vsub.s32 2, %v507
        %v509 = vrot.slane %v243, %v508
        %v510 = vadd.f32 %v498, %v509
        %v511 = vadd.f32 %v499, %v509
        %v512 = vadd.f32 %v500, %v509
        %v513 = vadd.f32 %v501, %v509
        %v514 = vadd.f32 %v502, %v509
        %v515 = vadd.f32 %v503, %v509
        %v516 = vadd.f32 %v504, %v509
        %v517 = vadd.f32 %v505, %v509
        %v518 = vxor.u32 %v510, 2147483648
        %v519 = vxor.u32 %v511, 2147483648
        %v520 = vxor.u32 %v512, 2147483648
        %v521 = vxor.u32 %v513, 2147483648
        %v522 = vxor.u32 %v514, 2147483648
        %v523 = vxor.u32 %v515, 2147483648
        %v524 = vxor.u32 %v516, 2147483648
        %v525 = vxor.u32 %v517, 2147483648
        %v526 = vmul.f32 %v518, 1.442695
        %v527 = vpow.pop %v526
        %v528 = vmul.f32 %v519, 1.442695
        %v529 = vpow.pop %v528
        %v530 = vmul.f32 %v520, 1.442695
        %v531 = vpow.pop %v530
        %v532 = vmul.f32 %v521, 1.442695
        %v533 = vpow.pop %v532
        %v534 = vmul.f32 %v522, 1.442695
        %v535 = vpow.pop %v534
        %v536 = vmul.f32 %v523, 1.442695
        %v537 = vpow.pop %v536
        %v538 = vmul.f32 %v524, 1.442695
        %v539 = vpow.pop %v538
        %v540 = vmul.f32 %v525, 1.442695
        %v541 = vpow.pop %v540
        %v542 = vadd.f32 %v527, 1.0
        %v543 = vadd.f32 %v529, 1.0
        %v544 = vadd.f32 %v531, 1.0
        %v545 = vadd.f32 %v533, 1.0
        %v546 = vadd.f32 %v535, 1.0
        %v547 = vadd.f32 %v537, 1.0
        %v548 = vadd.f32 %v539, 1.0
        %v549 = vadd.f32 %v541, 1.0
        %v550 = vrcp.pop %v542
        %v551 = vmul.f32 1.0, %v550
        %v552 = vrcp.pop %v543
        %v553 = vmul.f32 1.0, %v552
        %v554 = vrcp.pop %v544
        %v555 = vmul.f32 1.0, %v554
        %v556 = vrcp.pop %v545
        %v557 = vmul.f32 1.0, %v556
        %v558 = vrcp.pop %v546
        %v559 = vmul.f32 1.0, %v558
        %v560 = vrcp.pop %v547
        %v561 = vmul.f32 1.0, %v560
        %v562 = vrcp.pop %v548
        %v563 = vmul.f32 1.0, %v562
        %v564 = vrcp.pop %v549
        %v565 = vmul.f32 1.0, %v564
        %v566 = vmul.f32 %v510, %v551
        %v567 = vmul.f32 %v511, %v553
        %v568 = vmul.f32 %v512, %v555
        %v569 = vmul.f32 %v513, %v557
        %v570 = vmul.f32 %v514, %v559
        %v571 = vmul.f32 %v515, %v561
        %v572 = vmul.f32 %v516, %v563
        %v573 = vmul.f32 %v517, %v565
        %v574 = vpack.c.bf16 %v567, %v566
        %v575 = vpack.c.bf16 %v569, %v568
        %v576 = vpack.c.bf16 %v571, %v570
        %v577 = vpack.c.bf16 %v573, %v572
        %v582 = vunpack.c.l.b16 %v574
        %v583 = vunpack.c.h.b16 %v574
        %v584 = vunpack.c.l.b16 %v575
        %v585 = vunpack.c.h.b16 %v575
        %v586 = vunpack.c.l.b16 %v576
        %v587 = vunpack.c.h.b16 %v576
        %v588 = vunpack.c.l.b16 %v577
        %v589 = vunpack.c.h.b16 %v577
        %v590 = vpack.c.b16 %v582, %v582
        %v591 = vpack.c.b16 %v583, %v583
        %v592 = vpack.c.b16 %v584, %v584
        %v593 = vpack.c.b16 %v585, %v585
        %v594 = vpack.c.b16 %v586, %v586
        %v595 = vpack.c.b16 %v587, %v587
        %v596 = vpack.c.b16 %v588, %v588
        %v597 = vpack.c.b16 %v589, %v589
        %606 = vst [vmem:[%s215] sm:$0xf] %v590
        %607 = vst [vmem:[%s215 + $0x4] sm:$0xf] %v591
        %608 = vst [vmem:[%s215 + $0x8] sm:$0xf] %v592
        %609 = vst [vmem:[%s215 + $0xc] sm:$0xf] %v593
        %610 = vst [vmem:[%s215 + $0x10] sm:$0xf] %v594
        %611 = vst [vmem:[%s215 + $0x14] sm:$0xf] %v595
        %612 = vst [vmem:[%s215 + $0x18] sm:$0xf] %v596
        %613 = vst [vmem:[%s215 + $0x1c] sm:$0xf] %v597
        %s614 = sand.u32 %s97, 1
        %s615 = scalar_lea.sflag [#allocation4], %s614
        %s616 = sand.u32 %s97, 1
        %s617 = smul.addr %s616, 32
        %s618 = scalar_lea.vmem [#allocation8], %s617
        // Predicated region
        $region45: #{tpu_custom_call.1} parent=31 // pred_check
          %p619 = pneg %p107
        $region46: #{tpu_custom_call.1} parent=31 // pred_check_branch
          %621 = sbr.rel (%p619) target = $region48
        $region47: #{tpu_custom_call.1} parent=31 // pred_region
          %s622 = smul.u32 8, %s21
          %s624 = ssub.s32 512, 512
          %625 = vsyncadd %s615, %s624
          %s626 = smul.addr %s622, 64
          %s627 = scalar_lea.hbm %s3, %s626
          %s628 = sshll.u32 %s618, 4
          %s629 = int_to_ptr.vmem [resolvable:$true] %s628
          %634 = dma.vmem_to_hbm [thread:$0]  %s629, 512, %s627, %s615, 64, 64, 4
        $region48: #{tpu_custom_call.1} parent=31 // pred_fallthru
          _
      $region32: #{tpu_custom_call.1} parent=5 // pred_fallthru
        _
      %p635 = scmp.le.s32.totalorder 2, %s16
      // Predicated region
      $region49: #{tpu_custom_call.1} parent=5 // pred_check
        %p636 = pneg %p635
      $region50: #{tpu_custom_call.1} parent=5 // pred_check_branch
        %638 = sbr.rel (%p636) target = $region52
      $region51: #{tpu_custom_call.1} parent=5 // pred_region
        %s639 = ssub.s32 %s16, 2
        // Predicated region
        $region53: #{tpu_custom_call.1} parent=51 // pred_check
          %p640 = pneg %p113
        $region54: #{tpu_custom_call.1} parent=51 // pred_check_branch
          %642 = sbr.rel (%p640) target = $region56
        $region55: #{tpu_custom_call.1} parent=51 // pred_region
          %s643 = sand.u32 %s98, 1
          %s644 = scalar_lea.sflag [#allocation4], %s643
          %s645 = sand.u32 %s98, 1
          %s646 = smul.addr %s645, 32
          %s647 = scalar_lea.vmem [#allocation8], %s646
          %648 = dma.done %s644, 512
        $region56: #{tpu_custom_call.1} parent=51 // pred_fallthru
          _
      $region52: #{tpu_custom_call.1} parent=5 // pred_fallthru
        _
    $region6: #{tpu_custom_call.1} parent=1 // loop_footer
      %s20 = sadd.s32 1, %s16
    $region7: #{tpu_custom_call.1} parent=1 // loop_footer_branch
      %15 = sbr.rel target = $region3
    $region8: #{tpu_custom_call.1} parent=1 // loop_exit
      _
    %649 = vsyncpa [#allocation3], 1
    %s650 = scalar_lea.sflag [#allocation3], 1
    %651 = vsyncpa %s650, 1
    %652 = vsyncpa [#allocation6], 1
    %653 = vsyncpa [#allocation4], 1
    %s654 = scalar_lea.sflag [#allocation4], 1
    %655 = vsyncpa %s654, 1

</llo_original>
